<compile_context>
chip_gen: v5e
topology: v5e:2x2
jax: 0.10.0
libtpu: 0.0.40
codegen_flags: <defaults>
</compile_context>

<pallas_src>
import jax
import jax.numpy as jnp
from jax.experimental import pallas as pl
from jax.experimental.pallas import tpu as pltpu

HID_PAD = 128  # padded fused-hidden width -> MXU-native K for the second GEMM


def _round_up(x, m):
    return ((x + m - 1) // m) * m


# --------------------------------------------------------------------------- #
# One-time parameter prepack (hoisted out of the per-step forward).
# --------------------------------------------------------------------------- #
def prepack_hybrid_params(params):
    """Fuse nominal+uncertainty MLPs into one padded pair of GEMM operands.

    params = (w1n, b1n, w2n, b2n, w1u, b1u, w2u, b2u) with weights stored
    (in_features, out_features), biases (1, out_features).
    """
    (w1n, b1n, w2n, b2n, w1u, b1u, w2u, b2u) = params
    state, hidden = w1n.shape
    fused = 2 * hidden
    assert fused <= HID_PAD, "2*hidden must fit in the padded hidden width"

    # W1 = [w1n | w1u | 0]  (state, HID_PAD)
    w1 = jnp.zeros((state, HID_PAD), jnp.float32)
    w1 = w1.at[:, :hidden].set(w1n).at[:, hidden:fused].set(w1u)
    # B1 = [b1n | b1u | 0]  (1, HID_PAD)   (padded entries zero -> tanh(0)=0,
    # multiplied by zero W2 rows anyway)
    b1 = jnp.zeros((1, HID_PAD), jnp.float32)
    b1 = b1.at[:, :hidden].set(b1n.reshape(1, hidden))
    b1 = b1.at[:, hidden:fused].set(b1u.reshape(1, hidden))
    # W2 = [w2n ; w2u ; 0]  (HID_PAD, state)
    w2 = jnp.zeros((HID_PAD, state), jnp.float32)
    w2 = w2.at[:hidden, :].set(w2n).at[hidden:fused, :].set(w2u)
    # B2 = b2n + b2u        (1, state)
    b2 = (b2n + b2u).reshape(1, state).astype(jnp.float32)
    return w1, b1, w2, b2


# --------------------------------------------------------------------------- #
# Kernel: h = tanh(y @ W1 + B1); out = h @ W2 + B2  (both sub-models fused).
# --------------------------------------------------------------------------- #
def hybrid_kernel(y_ref, w1_ref, b1_ref, w2_ref, b2_ref, out_ref):
    y = y_ref[...]
    h = jnp.tanh(
        jnp.dot(y, w1_ref[...], preferred_element_type=jnp.float32)
        + b1_ref[...])
    out_ref[...] = (
        jnp.dot(h, w2_ref[...], preferred_element_type=jnp.float32)
        + b2_ref[...])


def hybrid_forward(t, y, packed_params):
    """Single HybridModel forward: dy/dt = nominal(t,y) + uncertainty(t,y).

    `t` is unused by the (autonomous) sub-models; kept for API parity.
    `packed_params` must come from prepack_hybrid_params (done once).
    """
    del t
    w1, b1, w2, b2 = packed_params
    batch, state = y.shape

    # Batch tile: >=2 tiles when batch >= 16 (lets v7x shard across its two
    # TensorCores via the "parallel" grid axis); cap at 1024 rows.
    if batch < 16:
        tb = batch
    else:
        tb = min(1024, max(8, _round_up(batch // 2, 8)))
    grid = (pl.cdiv(batch, tb),)

    return pl.pallas_call(
        hybrid_kernel,
        out_shape=jax.ShapeDtypeStruct((batch, state), jnp.float32),
        grid_spec=pltpu.PrefetchScalarGridSpec(
            num_scalar_prefetch=0,
            grid=grid,
            in_specs=[
                # activations: tiled over batch rows
                pl.BlockSpec((tb, state), lambda i: (i, 0)),
                # weights/biases: constant index_map -> DMA'd once, VMEM-resident
                pl.BlockSpec(w1.shape, lambda i: (0, 0)),
                pl.BlockSpec(b1.shape, lambda i: (0, 0)),
                pl.BlockSpec(w2.shape, lambda i: (0, 0)),
                pl.BlockSpec(b2.shape, lambda i: (0, 0)),
            ],
            out_specs=pl.BlockSpec((tb, state), lambda i: (i, 0)),
        ),
        compiler_params=pltpu.CompilerParams(
            dimension_semantics=("parallel",)),
    )(y, w1, b1, w2, b2)


# --------------------------------------------------------------------------- #
# Init + pure-JAX reference.
# --------------------------------------------------------------------------- #
def init_mlp_params(key, in_dim, hidden_dim, out_dim):
    """PyTorch nn.Linear-style uniform init, weights stored (in, out)."""
    k1, k2, k3, k4 = jax.random.split(key, 4)
    s1 = 1.0 / jnp.sqrt(in_dim)
    s2 = 1.0 / jnp.sqrt(hidden_dim)
    w1 = jax.random.uniform(k1, (in_dim, hidden_dim), jnp.float32, -s1, s1)
    b1 = jax.random.uniform(k2, (1, hidden_dim), jnp.float32, -s1, s1)
    w2 = jax.random.uniform(k3, (hidden_dim, out_dim), jnp.float32, -s2, s2)
    b2 = jax.random.uniform(k4, (1, out_dim), jnp.float32, -s2, s2)
    return w1, b1, w2, b2


def reference_forward(t, y, params):
    del t
    (w1n, b1n, w2n, b2n, w1u, b1u, w2u, b2u) = params
    dn = jnp.tanh(y @ w1n + b1n) @ w2n + b2n
    du = jnp.tanh(y @ w1u + b1u) @ w2u + b2u
    return dn + du


if __name__ == "__main__":
    batch = 8       # batch of cartpole states
    state = 4       # (x, x_dot, theta, theta_dot)
    hidden = 32

    key = jax.random.PRNGKey(0)
    k_y, k_nom, k_unc = jax.random.split(key, 3)

    y = jax.random.normal(k_y, (batch, state), dtype=jnp.float32)
    t = jnp.float32(0.0)

    nominal_params = init_mlp_params(k_nom, state, hidden, state)
    uncertainty_params = init_mlp_params(k_unc, state, hidden, state)
    params = nominal_params + uncertainty_params

    # One-time prepack (would be reused across all solver steps).
    packed = jax.tree_util.tree_map(jax.block_until_ready,
                                    prepack_hybrid_params(params))

    out = hybrid_forward(t, y, packed)
    out = jax.block_until_ready(out)

    ref = reference_forward(t, y, params)
    assert out.shape == (batch, state)
    assert jnp.allclose(out, ref, atol=1e-5, rtol=1e-5)

    print("KERNEL_OK")
</pallas_src>

<mosaic_0001>
module attributes {stable_mosaic.version = 11 : i64} {
  func.func @hybrid_kernel(%arg0: i32, %arg1: memref<8x4xf32, #tpu.memory_space<vmem>>, %arg2: memref<4x128xf32, #tpu.memory_space<vmem>>, %arg3: memref<1x128xf32, #tpu.memory_space<vmem>>, %arg4: memref<128x4xf32, #tpu.memory_space<vmem>>, %arg5: memref<1x4xf32, #tpu.memory_space<vmem>>, %arg6: memref<8x4xf32, #tpu.memory_space<vmem>>) attributes {dimension_semantics = [#tpu.dimension_semantics<parallel>], iteration_bounds = array<i64: 1>, scalar_prefetch = 0 : i64, scratch_operands = 0 : i64, tpu.core_type = #tpu.core_type<tc>, window_params = [{transform_indices = @transform_0, window_bounds = array<i64: 8, 4>}, {pipeline_mode = #tpu.pipeline_mode<synchronous>, transform_indices = @transform_1, window_bounds = array<i64: 4, 128>}, {pipeline_mode = #tpu.pipeline_mode<synchronous>, transform_indices = @transform_2, window_bounds = array<i64: 1, 128>}, {pipeline_mode = #tpu.pipeline_mode<synchronous>, transform_indices = @transform_3, window_bounds = array<i64: 128, 4>}, {pipeline_mode = #tpu.pipeline_mode<synchronous>, transform_indices = @transform_4, window_bounds = array<i64: 1, 4>}, {transform_indices = @transform_5, window_bounds = array<i64: 8, 4>}]} {
    %c0 = arith.constant 0 : index
    %c0_0 = arith.constant 0 : index
    %0 = vector.load %arg1[%c0, %c0_0] : memref<8x4xf32, #tpu.memory_space<vmem>>, vector<8x4xf32>
    %c0_1 = arith.constant 0 : index
    %c0_2 = arith.constant 0 : index
    %1 = vector.load %arg2[%c0_1, %c0_2] : memref<4x128xf32, #tpu.memory_space<vmem>>, vector<4x128xf32>
    %cst = arith.constant dense<0.000000e+00> : vector<8x128xf32>
    %2 = tpu.matmul %0, %1, %cst {dimension_numbers = #tpu.dot_dimension_numbers<[1], [0], [0], [1], [0, 0, 1, 1], [], []>} : vector<8x4xf32>, vector<4x128xf32>, vector<8x128xf32> -> vector<8x128xf32>
    %c0_3 = arith.constant 0 : index
    %c0_4 = arith.constant 0 : index
    %3 = vector.load %arg3[%c0_3, %c0_4] : memref<1x128xf32, #tpu.memory_space<vmem>>, vector<1x128xf32>
    %4 = vector.broadcast %3 : vector<1x128xf32> to vector<8x128xf32>
    %5 = arith.addf %2, %4 : vector<8x128xf32>
    %6 = math.tanh %5 : vector<8x128xf32>
    %c0_5 = arith.constant 0 : index
    %c0_6 = arith.constant 0 : index
    %7 = vector.load %arg4[%c0_5, %c0_6] : memref<128x4xf32, #tpu.memory_space<vmem>>, vector<128x4xf32>
    %cst_7 = arith.constant dense<0.000000e+00> : vector<8x4xf32>
    %8 = tpu.matmul %6, %7, %cst_7 {dimension_numbers = #tpu.dot_dimension_numbers<[1], [0], [0], [1], [0, 0, 1, 1], [], []>} : vector<8x128xf32>, vector<128x4xf32>, vector<8x4xf32> -> vector<8x4xf32>
    %c0_8 = arith.constant 0 : index
    %c0_9 = arith.constant 0 : index
    %9 = vector.load %arg5[%c0_8, %c0_9] : memref<1x4xf32, #tpu.memory_space<vmem>>, vector<1x4xf32>
    %10 = vector.broadcast %9 : vector<1x4xf32> to vector<8x4xf32>
    %11 = arith.addf %8, %10 : vector<8x4xf32>
    %c0_10 = arith.constant 0 : index
    %c0_11 = arith.constant 0 : index
    %12 = vector.load %arg6[%c0_10, %c0_11] : memref<8x4xf32, #tpu.memory_space<vmem>>, vector<8x4xf32>
    tpu.vector_store %arg6[%c0_10, %c0_11], %11 {strides = array<i32>} : memref<8x4xf32, #tpu.memory_space<vmem>>, vector<8x4xf32>,
    return
  }
  func.func @transform_0(%arg0: i32) -> (i32, i32) {
    %c0_i32 = arith.constant 0 : i32
    %c0_i32_0 = arith.constant 0 : i32
    return %arg0, %c0_i32 : i32, i32
  }
  func.func @transform_1(%arg0: i32) -> (i32, i32) {
    %c0_i32 = arith.constant 0 : i32
    %c0_i32_0 = arith.constant 0 : i32
    %c0_i32_1 = arith.constant 0 : i32
    return %c0_i32, %c0_i32_0 : i32, i32
  }
  func.func @transform_2(%arg0: i32) -> (i32, i32) {
    %c0_i32 = arith.constant 0 : i32
    %c0_i32_0 = arith.constant 0 : i32
    %c0_i32_1 = arith.constant 0 : i32
    return %c0_i32, %c0_i32_0 : i32, i32
  }
  func.func @transform_3(%arg0: i32) -> (i32, i32) {
    %c0_i32 = arith.constant 0 : i32
    %c0_i32_0 = arith.constant 0 : i32
    %c0_i32_1 = arith.constant 0 : i32
    return %c0_i32, %c0_i32_0 : i32, i32
  }
  func.func @transform_4(%arg0: i32) -> (i32, i32) {
    %c0_i32 = arith.constant 0 : i32
    %c0_i32_0 = arith.constant 0 : i32
    %c0_i32_1 = arith.constant 0 : i32
    return %c0_i32, %c0_i32_0 : i32, i32
  }
  func.func @transform_5(%arg0: i32) -> (i32, i32) {
    %c0_i32 = arith.constant 0 : i32
    %c0_i32_0 = arith.constant 0 : i32
    return %arg0, %c0_i32 : i32, i32
  }
}

</mosaic_0001>

<llo_original>
// kernel: tpu_custom_call.1
$region0: #{tpu_custom_call.1}
  #allocation0 [shape = 'u32[]', space=smem, size = 0x4, offset = 0x4, fixed_abs, tag = 'smem constant byte address 0x4 - core index']
  #allocation1 [shape = 'u32[72,128]{1,0:T(1,128)}', space=vmem, size = 0x9000, scoped, tag = 'internal scratch']
  %s0 = inlined_call_operand.vmem [shape: f32[8,4], index: 0, kind: input, shape index: {}]
  %s1 = inlined_call_operand.vmem [shape: f32[4,128], index: 1, kind: input, shape index: {}]
  %s2 = inlined_call_operand.vmem [shape: f32[1,128], index: 2, kind: input, shape index: {}]
  %s3 = inlined_call_operand.vmem [shape: f32[128,4], index: 3, kind: input, shape index: {}]
  %s4 = inlined_call_operand.vmem [shape: f32[1,4], index: 4, kind: input, shape index: {}]
  %s5 = inlined_call_operand.vmem [shape: f32[8,4], index: 5, kind: output, shape index: {}]
  %s6 = sld [smem:[#allocation0]]
  $region30: #{tpu_custom_call.1} parent=0
    _
  %s8 = ssub.s32 1, %s6
  %s9 = scalar_select 0, %s8, %s6
  // Predicated region
  $region2: #{tpu_custom_call.1} parent=0 // pred_check
    _
  $region3: #{tpu_custom_call.1} parent=0 // pred_check_branch
    %11 = sbr.rel (0) target = $region5
  $region4: #{tpu_custom_call.1} parent=0 // pred_region
    _
  $region5: #{tpu_custom_call.1} parent=0 // pred_fallthru
    _
  // Predicated region
  $region6: #{tpu_custom_call.1} parent=0 // pred_check
    _
  $region7: #{tpu_custom_call.1} parent=0 // pred_check_branch
    %13 = sbr.rel (0) target = $region9
  $region8: #{tpu_custom_call.1} parent=0 // pred_region
    _
  $region9: #{tpu_custom_call.1} parent=0 // pred_fallthru
    _
  // Predicated region
  $region10: #{tpu_custom_call.1} parent=0 // pred_check
    _
  $region11: #{tpu_custom_call.1} parent=0 // pred_check_branch
    %15 = sbr.rel (0) target = $region13
  $region12: #{tpu_custom_call.1} parent=0 // pred_region
    _
  $region13: #{tpu_custom_call.1} parent=0 // pred_fallthru
    _
  // Predicated region
  $region14: #{tpu_custom_call.1} parent=0 // pred_check
    _
  $region15: #{tpu_custom_call.1} parent=0 // pred_check_branch
    %17 = sbr.rel (0) target = $region17
  $region16: #{tpu_custom_call.1} parent=0 // pred_region
    _
  $region17: #{tpu_custom_call.1} parent=0 // pred_fallthru
    _
  // Predicated region
  $region18: #{tpu_custom_call.1} parent=0 // pred_check
    _
  $region19: #{tpu_custom_call.1} parent=0 // pred_check_branch
    %19 = sbr.rel (0) target = $region21
  $region20: #{tpu_custom_call.1} parent=0 // pred_region
    _
  $region21: #{tpu_custom_call.1} parent=0 // pred_fallthru
    _
  %v20 = vld [vmem:[%s0] sm:$0xff]
  %v21 = vld [vmem:[%s1] sm:$0xf]
  %v22 = vld [vmem:[%s2] sm:$0x1]
  %v24 = vperm.slane %v22, 0
  %vm26 = vcmask 31744
  %v28 = vsel %vm26, %v20, 0
  %vm30 = vcmask 1043456
  %v32 = vsel %vm30, %v21, 0
  %34 = vmatpush.msra.mxu0 0.0
  %35 = vmatpush.msra.mxu0 0.0
  %36 = vmatpush.msra.mxu0 0.0
  %37 = vmatpush.msra.mxu0 0.0
  %38 = vmatpush.msra.mxu0 0.0
  %39 = vmatpush.msra.mxu0 0.0
  %40 = vmatpush.msra.mxu0 0.0
  %41 = vmatpush.msra.mxu0 0.0
  %42 = vmatpush.msra.mxu0 0.0
  %43 = vmatpush.msra.mxu0 0.0
  %44 = vmatpush.msra.mxu0 0.0
  %45 = vmatpush.msra.mxu0 0.0
  %46 = vmatpush.msra.mxu0 0.0
  %47 = vmatpush.msra.mxu0 0.0
  %48 = vmatpush.msra.mxu0 0.0
  %49 = vmatpush.msra.mxu0 %v32
  %50 = vmatmul.f32.gmra.mxu0 %v28
  %v51 = vpop.f32.mrf.mxu0
  %v52 = vadd.f32 %v24, %v51
  %53 = vdwg.mxu0
  %v54 = vtanh.pop %v52
  %v55 = vld [vmem:[%s3] sm:$0xff]
  %v56 = vld [vmem:[%s3 + $0x8] sm:$0xff]
  %v57 = vld [vmem:[%s3 + $0x10] sm:$0xff]
  %v58 = vld [vmem:[%s3 + $0x18] sm:$0xff]
  %v59 = vld [vmem:[%s3 + $0x20] sm:$0xff]
  %v60 = vld [vmem:[%s3 + $0x28] sm:$0xff]
  %v61 = vld [vmem:[%s3 + $0x30] sm:$0xff]
  %v62 = vld [vmem:[%s3 + $0x38] sm:$0xff]
  %v63 = vld [vmem:[%s3 + $0x40] sm:$0xff]
  %v64 = vld [vmem:[%s3 + $0x48] sm:$0xff]
  %v65 = vld [vmem:[%s3 + $0x50] sm:$0xff]
  %v66 = vld [vmem:[%s3 + $0x58] sm:$0xff]
  %v67 = vld [vmem:[%s3 + $0x60] sm:$0xff]
  %v68 = vld [vmem:[%s3 + $0x68] sm:$0xff]
  %v69 = vld [vmem:[%s3 + $0x70] sm:$0xff]
  %v70 = vld [vmem:[%s3 + $0x78] sm:$0xff]
  %v71 = vld [vmem:[%s4] sm:$0x1]
  %v73 = vperm.slane %v71, 0
  %75 = vmatpush.msra.mxu0 %v70
  %76 = vmatpush.msra.mxu0 %v69
  %77 = vmatpush.msra.mxu0 %v68
  %78 = vmatpush.msra.mxu0 %v67
  %79 = vmatpush.msra.mxu0 %v66
  %80 = vmatpush.msra.mxu0 %v65
  %81 = vmatpush.msra.mxu0 %v64
  %82 = vmatpush.msra.mxu0 %v63
  %83 = vmatpush.msra.mxu0 %v62
  %84 = vmatpush.msra.mxu0 %v61
  %85 = vmatpush.msra.mxu0 %v60
  %86 = vmatpush.msra.mxu0 %v59
  %87 = vmatpush.msra.mxu0 %v58
  %88 = vmatpush.msra.mxu0 %v57
  %89 = vmatpush.msra.mxu0 %v56
  %90 = vmatpush.msra.mxu0 %v55
  %91 = vmatmul.f32.gmra.mxu0 %v54
  %v92 = vpop.f32.mrf.mxu0
  %v93 = vadd.f32 %v73, %v92
  %94 = vdwg.mxu0
  %95 = vst.msk [vmem:[%s5] sm:$0xff] %vm26, %v93
  // Predicated region
  $region22: #{tpu_custom_call.1} parent=0 // pred_check
    _
  $region23: #{tpu_custom_call.1} parent=0 // pred_check_branch
    %97 = sbr.rel (0) target = $region25
  $region24: #{tpu_custom_call.1} parent=0 // pred_region
    _
  $region25: #{tpu_custom_call.1} parent=0 // pred_fallthru
    _
  // Predicated region
  $region26: #{tpu_custom_call.1} parent=0 // pred_check
    _
  $region27: #{tpu_custom_call.1} parent=0 // pred_check_branch
    %99 = sbr.rel (0) target = $region29
  $region28: #{tpu_custom_call.1} parent=0 // pred_region
    _
  $region29: #{tpu_custom_call.1} parent=0 // pred_fallthru
    _

</llo_original>
